<compile_context>
chip_gen: v7x
topology: tpu7x:2x2x1
jax: 0.10.0
libtpu: 0.0.40
codegen_flags: <defaults>
</compile_context>

<pallas_src>
import jax
import jax.numpy as jnp
from jax import lax
from jax.experimental import pallas as pl
from jax.experimental.pallas import tpu as pltpu

BN_EPS = 1e-5


def _methane_kernel(x_ref,
                    w1_ref, b1_ref,
                    w2_ref, b2_ref,
                    w3_ref, b3_ref,
                    w4_ref, b4_ref,
                    o_ref):
    # x_ref: [T, in_f] (natural layout, batch on sublanes in HBM).
    # Weights are (out, in) exactly as nn.Linear stores them, BN pre-folded.
    x = x_ref[...].astype(jnp.float32)

    # Layer 1: contract the feature axis of both operands (W @ x^T without materializing
    # a transposed copy of x in HBM).  Result [64, T] is lane-dense (batch on lanes).
    h = lax.dot_general(w1_ref[...], x, (((1,), (1,)), ((), ())),
                        preferred_element_type=jnp.float32) + b1_ref[...]
    h = jnp.maximum(h, 0.0)                                          # [64, T]
    # TODO(synk): nn.Dropout(0.5) is identity in eval mode; training-mode masking not implemented.

    h = jnp.maximum(jnp.dot(w2_ref[...], h,
                            preferred_element_type=jnp.float32) + b2_ref[...], 0.0)   # [32, T]
    h = jnp.maximum(jnp.dot(w3_ref[...], h,
                            preferred_element_type=jnp.float32) + b3_ref[...], 0.0)   # [16, T]

    # Final 16 -> 1 layer on VPU + sublane reduce (avoids an M=1 MXU matmul).
    z = jnp.sum(h * w4_ref[...], axis=0, keepdims=True) + b4_ref[...]                 # [1, T]

    # Softplus (PyTorch default beta=1, threshold=20).
    sp = jnp.where(z > 20.0, z, jnp.log1p(jnp.exp(jnp.minimum(z, 20.0))))
    o_ref[...] = sp.astype(o_ref.dtype)


def _fold_bn_into_linear(w, b, gamma, beta, mean, var):
    """Fold inference-mode BatchNorm1d into the preceding Linear (w: [out, in], b: [out])."""
    s = gamma / jnp.sqrt(var + BN_EPS)        # [out]
    w_f = w * s[:, None]
    b_f = b * s + (beta - mean * s)
    return w_f.astype(jnp.float32), b_f.reshape(-1, 1).astype(jnp.float32)


def _round_up(v, m):
    return -(-v // m) * m


def methane_model_forward(x, params, *, tile_n=2048):
    """x: [N, input_size] float32. Returns [N, 1] float32 (eval-mode forward)."""
    x = x.astype(jnp.float32)
    n, in_f = x.shape
    (w1, b1, bn1), (w2, b2, bn2), (w3, b3, bn3), (w4, b4) = params

    w1f, b1f = _fold_bn_into_linear(w1, b1, *bn1)
    w2f, b2f = _fold_bn_into_linear(w2, b2, *bn2)
    w3f, b3f = _fold_bn_into_linear(w3, b3, *bn3)
    w4c = w4.reshape(-1, 1).astype(jnp.float32)   # [16, 1]
    b4c = b4.reshape(1, 1).astype(jnp.float32)    # [1, 1]

    # Batch lands on the lane axis inside the kernel: clamp tile to the 128-aligned batch and
    # zero-pad only when the batch is not already a tile multiple.
    tile_n = _round_up(min(int(tile_n), _round_up(n, 128)), 128)
    padded_n = _round_up(n, tile_n)
    num_tiles = padded_n // tile_n

    if padded_n != n:
        x = jnp.pad(x, ((0, padded_n - n), (0, 0)))

    const = lambda a: pl.BlockSpec(a.shape, lambda i: (0, 0))
    in_specs = [
        pl.BlockSpec((tile_n, in_f), lambda i: (i, 0)),   # contiguous batch-tile of rows
        const(w1f), const(b1f),
        const(w2f), const(b2f),
        const(w3f), const(b3f),
        const(w4c), const(b4c),
    ]
    out_spec = pl.BlockSpec((1, tile_n), lambda i: (0, i))    # lane-dense output row

    out = pl.pallas_call(
        _methane_kernel,
        out_shape=jax.ShapeDtypeStruct((1, padded_n), jnp.float32),
        grid_spec=pltpu.PrefetchScalarGridSpec(
            num_scalar_prefetch=0,
            grid=(num_tiles,),
            in_specs=in_specs,
            out_specs=out_spec,
        ),
        compiler_params=pltpu.CompilerParams(
            dimension_semantics=("parallel",)),
    )(x, w1f, b1f, w2f, b2f, w3f, b3f, w4c, b4c)

    return out[0, :n].reshape(n, 1)


def init_params(key, input_size):
    """Deterministic init mirroring the shapes in MethaneModel.__init__."""
    dims = [(input_size, 64), (64, 32), (32, 16), (16, 1)]
    keys = jax.random.split(key, 20)   # 4 linear layers x 2 keys + 3 BN layers x 4 keys
    ki = iter(keys)

    def linear(in_f, out_f):
        bound = 1.0 / jnp.sqrt(in_f)
        w = jax.random.uniform(next(ki), (out_f, in_f), jnp.float32, -bound, bound)
        b = jax.random.uniform(next(ki), (out_f,), jnp.float32, -bound, bound)
        return w, b

    def bn(c):
        gamma = 1.0 + 0.1 * jax.random.normal(next(ki), (c,), jnp.float32)
        beta = 0.1 * jax.random.normal(next(ki), (c,), jnp.float32)
        mean = 0.05 * jax.random.normal(next(ki), (c,), jnp.float32)
        var = jnp.abs(1.0 + 0.1 * jax.random.normal(next(ki), (c,), jnp.float32))
        return gamma, beta, mean, var

    w1, b1 = linear(*dims[0]); bn1 = bn(64)
    w2, b2 = linear(*dims[1]); bn2 = bn(32)
    w3, b3 = linear(*dims[2]); bn3 = bn(16)
    w4, b4 = linear(*dims[3])
    return (w1, b1, bn1), (w2, b2, bn2), (w3, b3, bn3), (w4, b4)


def _reference_forward(x, params):
    (w1, b1, bn1), (w2, b2, bn2), (w3, b3, bn3), (w4, b4) = params
    hp = jax.lax.Precision.HIGHEST

    def layer(h, w, b, bnp):
        g, be, m, v = bnp
        h = jnp.dot(h, w.T, precision=hp) + b
        h = (h - m) / jnp.sqrt(v + BN_EPS) * g + be
        return jnp.maximum(h, 0.0)

    h = layer(x, w1, b1, bn1)
    h = layer(h, w2, b2, bn2)
    h = layer(h, w3, b3, bn3)
    z = jnp.dot(h, w4.T, precision=hp) + b4
    return jnp.where(z > 20.0, z, jnp.log1p(jnp.exp(jnp.minimum(z, 20.0))))


if __name__ == "__main__":
    key = jax.random.PRNGKey(0)
    k_par, k_x = jax.random.split(key)

    input_size = 20
    batch = 200                     # not a multiple of 128 -> exercises the padding path
    params = init_params(k_par, input_size)
    x = jax.random.normal(k_x, (batch, input_size), jnp.float32)

    out = methane_model_forward(x, params)
    out = jax.block_until_ready(out)

    ref = _reference_forward(x, params)
    assert out.shape == (batch, 1)
    assert jnp.allclose(out, ref, atol=5e-4, rtol=5e-4), "mismatch vs reference"
    print("KERNEL_OK")
</pallas_src>

<mosaic_0001>
module attributes {stable_mosaic.version = 11 : i64} {
  func.func @_methane_kernel(%arg0: i32, %arg1: memref<256x20xf32, #tpu.memory_space<vmem>>, %arg2: memref<64x20xf32, #tpu.memory_space<vmem>>, %arg3: memref<64x1xf32, #tpu.memory_space<vmem>>, %arg4: memref<32x64xf32, #tpu.memory_space<vmem>>, %arg5: memref<32x1xf32, #tpu.memory_space<vmem>>, %arg6: memref<16x32xf32, #tpu.memory_space<vmem>>, %arg7: memref<16x1xf32, #tpu.memory_space<vmem>>, %arg8: memref<16x1xf32, #tpu.memory_space<vmem>>, %arg9: memref<1x1xf32, #tpu.memory_space<vmem>>, %arg10: memref<1x256xf32, #tpu.memory_space<vmem>>) attributes {dimension_semantics = [#tpu.dimension_semantics<parallel>], iteration_bounds = array<i64: 1>, scalar_prefetch = 0 : i64, scratch_operands = 0 : i64, tpu.core_type = #tpu.core_type<tc>, window_params = [{transform_indices = @transform_0, window_bounds = array<i64: 256, 20>}, {pipeline_mode = #tpu.pipeline_mode<synchronous>, transform_indices = @transform_1, window_bounds = array<i64: 64, 20>}, {pipeline_mode = #tpu.pipeline_mode<synchronous>, transform_indices = @transform_2, window_bounds = array<i64: 64, 1>}, {pipeline_mode = #tpu.pipeline_mode<synchronous>, transform_indices = @transform_3, window_bounds = array<i64: 32, 64>}, {pipeline_mode = #tpu.pipeline_mode<synchronous>, transform_indices = @transform_4, window_bounds = array<i64: 32, 1>}, {pipeline_mode = #tpu.pipeline_mode<synchronous>, transform_indices = @transform_5, window_bounds = array<i64: 16, 32>}, {pipeline_mode = #tpu.pipeline_mode<synchronous>, transform_indices = @transform_6, window_bounds = array<i64: 16, 1>}, {pipeline_mode = #tpu.pipeline_mode<synchronous>, transform_indices = @transform_7, window_bounds = array<i64: 16, 1>}, {pipeline_mode = #tpu.pipeline_mode<synchronous>, transform_indices = @transform_8, window_bounds = array<i64: 1, 1>}, {transform_indices = @transform_9, window_bounds = array<i64: 1, 256>}]} {
    %c0 = arith.constant 0 : index
    %c0_0 = arith.constant 0 : index
    %0 = vector.load %arg1[%c0, %c0_0] : memref<256x20xf32, #tpu.memory_space<vmem>>, vector<256x20xf32>
    %c0_1 = arith.constant 0 : index
    %c0_2 = arith.constant 0 : index
    %1 = vector.load %arg2[%c0_1, %c0_2] : memref<64x20xf32, #tpu.memory_space<vmem>>, vector<64x20xf32>
    %cst = arith.constant dense<0.000000e+00> : vector<64x256xf32>
    %2 = tpu.matmul %1, %0, %cst {dimension_numbers = #tpu.dot_dimension_numbers<[1], [1], [0], [0], [0, 0, 1, 0], [], []>} : vector<64x20xf32>, vector<256x20xf32>, vector<64x256xf32> -> vector<64x256xf32>
    %c0_3 = arith.constant 0 : index
    %c0_4 = arith.constant 0 : index
    %3 = vector.load %arg3[%c0_3, %c0_4] : memref<64x1xf32, #tpu.memory_space<vmem>>, vector<64x1xf32>
    %4 = vector.broadcast %3 : vector<64x1xf32> to vector<64x256xf32>
    %5 = arith.addf %2, %4 : vector<64x256xf32>
    %cst_5 = arith.constant 0.000000e+00 : f32
    %6 = vector.broadcast %cst_5 : f32 to vector<64x256xf32>
    %7 = arith.maximumf %5, %6 : vector<64x256xf32>
    %c0_6 = arith.constant 0 : index
    %c0_7 = arith.constant 0 : index
    %8 = vector.load %arg4[%c0_6, %c0_7] : memref<32x64xf32, #tpu.memory_space<vmem>>, vector<32x64xf32>
    %cst_8 = arith.constant dense<0.000000e+00> : vector<32x256xf32>
    %9 = tpu.matmul %8, %7, %cst_8 {dimension_numbers = #tpu.dot_dimension_numbers<[1], [0], [0], [1], [0, 0, 1, 1], [], []>} : vector<32x64xf32>, vector<64x256xf32>, vector<32x256xf32> -> vector<32x256xf32>
    %c0_9 = arith.constant 0 : index
    %c0_10 = arith.constant 0 : index
    %10 = vector.load %arg5[%c0_9, %c0_10] : memref<32x1xf32, #tpu.memory_space<vmem>>, vector<32x1xf32>
    %11 = vector.broadcast %10 : vector<32x1xf32> to vector<32x256xf32>
    %12 = arith.addf %9, %11 : vector<32x256xf32>
    %cst_11 = arith.constant 0.000000e+00 : f32
    %13 = vector.broadcast %cst_11 : f32 to vector<32x256xf32>
    %14 = arith.maximumf %12, %13 : vector<32x256xf32>
    %c0_12 = arith.constant 0 : index
    %c0_13 = arith.constant 0 : index
    %15 = vector.load %arg6[%c0_12, %c0_13] : memref<16x32xf32, #tpu.memory_space<vmem>>, vector<16x32xf32>
    %cst_14 = arith.constant dense<0.000000e+00> : vector<16x256xf32>
    %16 = tpu.matmul %15, %14, %cst_14 {dimension_numbers = #tpu.dot_dimension_numbers<[1], [0], [0], [1], [0, 0, 1, 1], [], []>} : vector<16x32xf32>, vector<32x256xf32>, vector<16x256xf32> -> vector<16x256xf32>
    %c0_15 = arith.constant 0 : index
    %c0_16 = arith.constant 0 : index
    %17 = vector.load %arg7[%c0_15, %c0_16] : memref<16x1xf32, #tpu.memory_space<vmem>>, vector<16x1xf32>
    %18 = vector.broadcast %17 : vector<16x1xf32> to vector<16x256xf32>
    %19 = arith.addf %16, %18 : vector<16x256xf32>
    %cst_17 = arith.constant 0.000000e+00 : f32
    %20 = vector.broadcast %cst_17 : f32 to vector<16x256xf32>
    %21 = arith.maximumf %19, %20 : vector<16x256xf32>
    %c0_18 = arith.constant 0 : index
    %c0_19 = arith.constant 0 : index
    %22 = vector.load %arg8[%c0_18, %c0_19] : memref<16x1xf32, #tpu.memory_space<vmem>>, vector<16x1xf32>
    %23 = vector.broadcast %22 : vector<16x1xf32> to vector<16x256xf32>
    %24 = arith.mulf %21, %23 : vector<16x256xf32>
    %cst_20 = arith.constant dense<0.000000e+00> : vector<256xf32>
    %25 = vector.multi_reduction <add>, %24, %cst_20 [0] : vector<16x256xf32> to vector<256xf32>
    %26 = vector.shape_cast %25 : vector<256xf32> to vector<1x256xf32>
    %c0_21 = arith.constant 0 : index
    %c0_22 = arith.constant 0 : index
    %27 = vector.load %arg9[%c0_21, %c0_22] : memref<1x1xf32, #tpu.memory_space<vmem>>, vector<1x1xf32>
    %28 = vector.broadcast %27 : vector<1x1xf32> to vector<1x256xf32>
    %29 = arith.addf %26, %28 : vector<1x256xf32>
    %cst_23 = arith.constant 2.000000e+01 : f32
    %30 = vector.broadcast %cst_23 : f32 to vector<1x256xf32>
    %31 = arith.cmpf ogt, %29, %30 : vector<1x256xf32>
    %cst_24 = arith.constant 2.000000e+01 : f32
    %32 = vector.broadcast %cst_24 : f32 to vector<1x256xf32>
    %33 = arith.minimumf %29, %32 : vector<1x256xf32>
    %34 = math.exp %33 : vector<1x256xf32>
    %35 = math.log1p %34 : vector<1x256xf32>
    %36 = arith.select %31, %29, %35 : vector<1x256xi1>, vector<1x256xf32>
    %c0_25 = arith.constant 0 : index
    %c0_26 = arith.constant 0 : index
    %37 = vector.load %arg10[%c0_25, %c0_26] : memref<1x256xf32, #tpu.memory_space<vmem>>, vector<1x256xf32>
    tpu.vector_store %arg10[%c0_25, %c0_26], %36 {strides = array<i32>} : memref<1x256xf32, #tpu.memory_space<vmem>>, vector<1x256xf32>,
    return
  }
  func.func @transform_0(%arg0: i32) -> (i32, i32) {
    %c0_i32 = arith.constant 0 : i32
    %c0_i32_0 = arith.constant 0 : i32
    return %arg0, %c0_i32 : i32, i32
  }
  func.func @transform_1(%arg0: i32) -> (i32, i32) {
    %c0_i32 = arith.constant 0 : i32
    %c0_i32_0 = arith.constant 0 : i32
    %c0_i32_1 = arith.constant 0 : i32
    return %c0_i32, %c0_i32_0 : i32, i32
  }
  func.func @transform_2(%arg0: i32) -> (i32, i32) {
    %c0_i32 = arith.constant 0 : i32
    %c0_i32_0 = arith.constant 0 : i32
    %c0_i32_1 = arith.constant 0 : i32
    return %c0_i32, %c0_i32_0 : i32, i32
  }
  func.func @transform_3(%arg0: i32) -> (i32, i32) {
    %c0_i32 = arith.constant 0 : i32
    %c0_i32_0 = arith.constant 0 : i32
    %c0_i32_1 = arith.constant 0 : i32
    return %c0_i32, %c0_i32_0 : i32, i32
  }
  func.func @transform_4(%arg0: i32) -> (i32, i32) {
    %c0_i32 = arith.constant 0 : i32
    %c0_i32_0 = arith.constant 0 : i32
    %c0_i32_1 = arith.constant 0 : i32
    return %c0_i32, %c0_i32_0 : i32, i32
  }
  func.func @transform_5(%arg0: i32) -> (i32, i32) {
    %c0_i32 = arith.constant 0 : i32
    %c0_i32_0 = arith.constant 0 : i32
    %c0_i32_1 = arith.constant 0 : i32
    return %c0_i32, %c0_i32_0 : i32, i32
  }
  func.func @transform_6(%arg0: i32) -> (i32, i32) {
    %c0_i32 = arith.constant 0 : i32
    %c0_i32_0 = arith.constant 0 : i32
    %c0_i32_1 = arith.constant 0 : i32
    return %c0_i32, %c0_i32_0 : i32, i32
  }
  func.func @transform_7(%arg0: i32) -> (i32, i32) {
    %c0_i32 = arith.constant 0 : i32
    %c0_i32_0 = arith.constant 0 : i32
    %c0_i32_1 = arith.constant 0 : i32
    return %c0_i32, %c0_i32_0 : i32, i32
  }
  func.func @transform_8(%arg0: i32) -> (i32, i32) {
    %c0_i32 = arith.constant 0 : i32
    %c0_i32_0 = arith.constant 0 : i32
    %c0_i32_1 = arith.constant 0 : i32
    return %c0_i32, %c0_i32_0 : i32, i32
  }
  func.func @transform_9(%arg0: i32) -> (i32, i32) {
    %c0_i32 = arith.constant 0 : i32
    %c0_i32_0 = arith.constant 0 : i32
    return %c0_i32, %arg0 : i32, i32
  }
}

</mosaic_0001>

<llo_original>
// kernel: tpu_custom_call.1
$region0: #{tpu_custom_call.1}
  #allocation0 [shape = 'u32[]', space=smem, size = 0x4, offset = 0x4, fixed_abs, tag = 'smem constant byte address 0x4 - core index']
  #allocation1 [shape = 'u32[144,128]{1,0:T(1,128)}', space=vmem, size = 0x12000, scoped, tag = 'internal scratch']
  #allocation2 [shape = 'f32[1,1]{1,0:T(1,128)S(1)}', space=vmem, size = 0x200, scoped, tag = 'scoped memory for tpu_custom_call.1']
  %s0 = inlined_call_operand.vmem [shape: f32[256,20], index: 0, kind: input, shape index: {}]
  %s1 = inlined_call_operand.vmem [shape: f32[64,20], index: 1, kind: input, shape index: {}]
  %s2 = inlined_call_operand.vmem [shape: f32[64,1], index: 2, kind: input, shape index: {}]
  %s3 = inlined_call_operand.vmem [shape: f32[32,64], index: 3, kind: input, shape index: {}]
  %s4 = inlined_call_operand.vmem [shape: f32[32,1], index: 4, kind: input, shape index: {}]
  %s5 = inlined_call_operand.vmem [shape: f32[16,32], index: 5, kind: input, shape index: {}]
  %s6 = inlined_call_operand.vmem [shape: f32[16,1], index: 6, kind: input, shape index: {}]
  %s7 = inlined_call_operand.vmem [shape: f32[16,1], index: 7, kind: input, shape index: {}]
  %s8 = inlined_call_operand.<no memory space> [shape: f32[1,1], index: 8, kind: input, shape index: {}]
  %s9 = inlined_call_operand.hbm [shape: f32[1,256], index: 9, kind: output, shape index: {}]
  %s10 = sld [smem:[#allocation0]]
  $region46: #{tpu_custom_call.1} parent=0
    _
  %s12 = ssub.s32 1, %s10
  %s13 = scalar_select 0, %s12, %s10
  %v14 = vstv %s8
  %15 = vst [vmem:[#allocation2] sm:$0x1] %v14
  $region1: #{tpu_custom_call.1} parent=0
    #allocation3 [shape = 'u8[1024]{0}', space=vmem, size = 0x400, scoped, tag = 'output window, operand 0, single buffered']
    #allocation4 [shape = 's32[1]{0}', space=sflag, size = 0x4, scoped, tag = 'scoped memory for tpu_custom_call.1']
    %16 = vsyncpa [#allocation4], 0
    // Predicated region
    $region2: #{tpu_custom_call.1} parent=1 // pred_check
      _
    $region3: #{tpu_custom_call.1} parent=1 // pred_check_branch
      %18 = sbr.rel (0) target = $region5
    $region4: #{tpu_custom_call.1} parent=1 // pred_region
      _
    $region5: #{tpu_custom_call.1} parent=1 // pred_fallthru
      _
    // Predicated region
    $region6: #{tpu_custom_call.1} parent=1 // pred_check
      _
    $region7: #{tpu_custom_call.1} parent=1 // pred_check_branch
      %20 = sbr.rel (0) target = $region9
    $region8: #{tpu_custom_call.1} parent=1 // pred_region
      _
    $region9: #{tpu_custom_call.1} parent=1 // pred_fallthru
      _
    // Predicated region
    $region10: #{tpu_custom_call.1} parent=1 // pred_check
      _
    $region11: #{tpu_custom_call.1} parent=1 // pred_check_branch
      %22 = sbr.rel (0) target = $region13
    $region12: #{tpu_custom_call.1} parent=1 // pred_region
      _
    $region13: #{tpu_custom_call.1} parent=1 // pred_fallthru
      _
    // Predicated region
    $region14: #{tpu_custom_call.1} parent=1 // pred_check
      _
    $region15: #{tpu_custom_call.1} parent=1 // pred_check_branch
      %24 = sbr.rel (0) target = $region17
    $region16: #{tpu_custom_call.1} parent=1 // pred_region
      _
    $region17: #{tpu_custom_call.1} parent=1 // pred_fallthru
      _
    // Predicated region
    $region18: #{tpu_custom_call.1} parent=1 // pred_check
      _
    $region19: #{tpu_custom_call.1} parent=1 // pred_check_branch
      %26 = sbr.rel (0) target = $region21
    $region20: #{tpu_custom_call.1} parent=1 // pred_region
      _
    $region21: #{tpu_custom_call.1} parent=1 // pred_fallthru
      _
    // Predicated region
    $region22: #{tpu_custom_call.1} parent=1 // pred_check
      _
    $region23: #{tpu_custom_call.1} parent=1 // pred_check_branch
      %28 = sbr.rel (0) target = $region25
    $region24: #{tpu_custom_call.1} parent=1 // pred_region
      _
    $region25: #{tpu_custom_call.1} parent=1 // pred_fallthru
      _
    // Predicated region
    $region26: #{tpu_custom_call.1} parent=1 // pred_check
      _
    $region27: #{tpu_custom_call.1} parent=1 // pred_check_branch
      %30 = sbr.rel (0) target = $region29
    $region28: #{tpu_custom_call.1} parent=1 // pred_region
      _
    $region29: #{tpu_custom_call.1} parent=1 // pred_fallthru
      _
    // Predicated region
    $region30: #{tpu_custom_call.1} parent=1 // pred_check
      _
    $region31: #{tpu_custom_call.1} parent=1 // pred_check_branch
      %32 = sbr.rel (0) target = $region33
    $region32: #{tpu_custom_call.1} parent=1 // pred_region
      _
    $region33: #{tpu_custom_call.1} parent=1 // pred_fallthru
      _
    // Predicated region
    $region34: #{tpu_custom_call.1} parent=1 // pred_check
      _
    $region35: #{tpu_custom_call.1} parent=1 // pred_check_branch
      %34 = sbr.rel (0) target = $region37
    $region36: #{tpu_custom_call.1} parent=1 // pred_region
      _
    $region37: #{tpu_custom_call.1} parent=1 // pred_fallthru
      _
    %v35 = vld [vmem:[%s0] sm:$0xff]
    %v36 = vld [vmem:[%s0 + $0x8] sm:$0xff]
    %v37 = vld [vmem:[%s0 + $0x10] sm:$0xff]
    %v38 = vld [vmem:[%s0 + $0x18] sm:$0xff]
    %v39 = vld [vmem:[%s0 + $0x20] sm:$0xff]
    %v40 = vld [vmem:[%s0 + $0x28] sm:$0xff]
    %v41 = vld [vmem:[%s0 + $0x30] sm:$0xff]
    %v42 = vld [vmem:[%s0 + $0x38] sm:$0xff]
    %v43 = vld [vmem:[%s0 + $0x40] sm:$0xff]
    %v44 = vld [vmem:[%s0 + $0x48] sm:$0xff]
    %v45 = vld [vmem:[%s0 + $0x50] sm:$0xff]
    %v46 = vld [vmem:[%s0 + $0x58] sm:$0xff]
    %v47 = vld [vmem:[%s0 + $0x60] sm:$0xff]
    %v48 = vld [vmem:[%s0 + $0x68] sm:$0xff]
    %v49 = vld [vmem:[%s0 + $0x70] sm:$0xff]
    %v50 = vld [vmem:[%s0 + $0x78] sm:$0xff]
    %v51 = vld [vmem:[%s0 + $0x80] sm:$0xff]
    %v52 = vld [vmem:[%s0 + $0x88] sm:$0xff]
    %v53 = vld [vmem:[%s0 + $0x90] sm:$0xff]
    %v54 = vld [vmem:[%s0 + $0x98] sm:$0xff]
    %v55 = vld [vmem:[%s0 + $0xa0] sm:$0xff]
    %v56 = vld [vmem:[%s0 + $0xa8] sm:$0xff]
    %v57 = vld [vmem:[%s0 + $0xb0] sm:$0xff]
    %v58 = vld [vmem:[%s0 + $0xb8] sm:$0xff]
    %v59 = vld [vmem:[%s0 + $0xc0] sm:$0xff]
    %v60 = vld [vmem:[%s0 + $0xc8] sm:$0xff]
    %v61 = vld [vmem:[%s0 + $0xd0] sm:$0xff]
    %v62 = vld [vmem:[%s0 + $0xd8] sm:$0xff]
    %v63 = vld [vmem:[%s0 + $0xe0] sm:$0xff]
    %v64 = vld [vmem:[%s0 + $0xe8] sm:$0xff]
    %v65 = vld [vmem:[%s0 + $0xf0] sm:$0xff]
    %v66 = vld [vmem:[%s0 + $0xf8] sm:$0xff]
    %v67 = vld [vmem:[%s1] sm:$0xff]
    %v68 = vld [vmem:[%s1 + $0x8] sm:$0xff]
    %v69 = vld [vmem:[%s1 + $0x10] sm:$0xff]
    %v70 = vld [vmem:[%s1 + $0x18] sm:$0xff]
    %v71 = vld [vmem:[%s1 + $0x20] sm:$0xff]
    %v72 = vld [vmem:[%s1 + $0x28] sm:$0xff]
    %v73 = vld [vmem:[%s1 + $0x30] sm:$0xff]
    %v74 = vld [vmem:[%s1 + $0x38] sm:$0xff]
    %v75 = vld [vmem:[%s2] sm:$0xff]
    %v76 = vld [vmem:[%s2 + $0x8] sm:$0xff]
    %v77 = vld [vmem:[%s2 + $0x10] sm:$0xff]
    %v78 = vld [vmem:[%s2 + $0x18] sm:$0xff]
    %v79 = vld [vmem:[%s2 + $0x20] sm:$0xff]
    %v80 = vld [vmem:[%s2 + $0x28] sm:$0xff]
    %v81 = vld [vmem:[%s2 + $0x30] sm:$0xff]
    %v82 = vld [vmem:[%s2 + $0x38] sm:$0xff]
    %84 = vset.pattern.permute.xlu0 0
    %85 = vperm.xlu0 %84, %v75
    %v86 = vpop.permute.xlu0 %85
    %89 = vset.pattern.permute.xlu0 0
    %90 = vperm.xlu0 %89, %v76
    %v91 = vpop.permute.xlu0 %90
    %94 = vset.pattern.permute.xlu0 0
    %95 = vperm.xlu0 %94, %v77
    %v96 = vpop.permute.xlu0 %95
    %99 = vset.pattern.permute.xlu0 0
    %100 = vperm.xlu0 %99, %v78
    %v101 = vpop.permute.xlu0 %100
    %104 = vset.pattern.permute.xlu0 0
    %105 = vperm.xlu0 %104, %v79
    %v106 = vpop.permute.xlu0 %105
    %109 = vset.pattern.permute.xlu0 0
    %110 = vperm.xlu0 %109, %v80
    %v111 = vpop.permute.xlu0 %110
    %114 = vset.pattern.permute.xlu0 0
    %115 = vperm.xlu0 %114, %v81
    %v116 = vpop.permute.xlu0 %115
    %119 = vset.pattern.permute.xlu0 0
    %120 = vperm.xlu0 %119, %v82
    %v121 = vpop.permute.xlu0 %120
    %vm123 = vcmask 162816
    %v125 = vsel %vm123, %v67, 0
    %v128 = vsel %vm123, %v68, 0
    %v131 = vsel %vm123, %v69, 0
    %v134 = vsel %vm123, %v70, 0
    %v137 = vsel %vm123, %v71, 0
    %v140 = vsel %vm123, %v72, 0
    %v143 = vsel %vm123, %v73, 0
    %v146 = vsel %vm123, %v74, 0
    %v149 = vsel %vm123, %v35, 0
    %v152 = vsel %vm123, %v36, 0
    %v155 = vsel %vm123, %v37, 0
    %v158 = vsel %vm123, %v38, 0
    %v161 = vsel %vm123, %v39, 0
    %v164 = vsel %vm123, %v40, 0
    %v167 = vsel %vm123, %v41, 0
    %v170 = vsel %vm123, %v42, 0
    %v173 = vsel %vm123, %v43, 0
    %v176 = vsel %vm123, %v44, 0
    %v179 = vsel %vm123, %v45, 0
    %v182 = vsel %vm123, %v46, 0
    %v185 = vsel %vm123, %v47, 0
    %v188 = vsel %vm123, %v48, 0
    %v191 = vsel %vm123, %v49, 0
    %v194 = vsel %vm123, %v50, 0
    %v197 = vsel %vm123, %v51, 0
    %v200 = vsel %vm123, %v52, 0
    %v203 = vsel %vm123, %v53, 0
    %v206 = vsel %vm123, %v54, 0
    %v209 = vsel %vm123, %v55, 0
    %v212 = vsel %vm123, %v56, 0
    %v215 = vsel %vm123, %v57, 0
    %v218 = vsel %vm123, %v58, 0
    %v221 = vsel %vm123, %v59, 0
    %v224 = vsel %vm123, %v60, 0
    %v227 = vsel %vm123, %v61, 0
    %v230 = vsel %vm123, %v62, 0
    %v233 = vsel %vm123, %v63, 0
    %v236 = vsel %vm123, %v64, 0
    %v239 = vsel %vm123, %v65, 0
    %v242 = vsel %vm123, %v66, 0
    %244 = vmatprep.subr.mxu0 0.0
    %245 = vmatpush1.xpose.msra.mxu0 %v149
    %246 = vmatprep.subr.mxu0 0.0
    %247 = vmatpush1.xpose.msra.mxu0 %v152
    %248 = vmatprep.subr.mxu0 0.0
    %249 = vmatpush1.xpose.msra.mxu0 %v155
    %250 = vmatprep.subr.mxu0 0.0
    %251 = vmatpush1.xpose.msra.mxu0 %v158
    %252 = vmatprep.subr.mxu0 0.0
    %253 = vmatpush1.xpose.msra.mxu0 %v161
    %254 = vmatprep.subr.mxu0 0.0
    %255 = vmatpush1.xpose.msra.mxu0 %v164
    %256 = vmatprep.subr.mxu0 0.0
    %257 = vmatpush1.xpose.msra.mxu0 %v167
    %258 = vmatprep.subr.mxu0 0.0
    %259 = vmatpush1.xpose.msra.mxu0 %v170
    %260 = vmatprep.subr.mxu0 0.0
    %261 = vmatpush1.xpose.msra.mxu0 %v173
    %262 = vmatprep.subr.mxu0 0.0
    %263 = vmatpush1.xpose.msra.mxu0 %v176
    %264 = vmatprep.subr.mxu0 0.0
    %265 = vmatpush1.xpose.msra.mxu0 %v179
    %266 = vmatprep.subr.mxu0 0.0
    %267 = vmatpush1.xpose.msra.mxu0 %v182
    %268 = vmatprep.subr.mxu0 0.0
    %269 = vmatpush1.xpose.msra.mxu0 %v185
    %270 = vmatprep.subr.mxu0 0.0
    %271 = vmatpush1.xpose.msra.mxu0 %v188
    %272 = vmatprep.subr.mxu0 0.0
    %273 = vmatpush1.xpose.msra.mxu0 %v191
    %274 = vmatprep.subr.mxu0 0.0
    %275 = vmatpush1.xpose.msra.mxu0 %v194
    %276 = vmatprep.subr.mxu0 0.0
    %277 = vmatpush1.xpose.msra.mxu0 %v197
    %278 = vmatprep.subr.mxu0 0.0
    %279 = vmatpush1.xpose.msra.mxu0 %v200
    %280 = vmatprep.subr.mxu0 0.0
    %281 = vmatpush1.xpose.msra.mxu0 %v203
    %282 = vmatprep.subr.mxu0 0.0
    %283 = vmatpush1.xpose.msra.mxu0 %v206
    %284 = vmatprep.subr.mxu0 0.0
    %285 = vmatpush1.xpose.msra.mxu0 %v209
    %286 = vmatprep.subr.mxu0 0.0
    %287 = vmatpush1.xpose.msra.mxu0 %v212
    %288 = vmatprep.subr.mxu0 0.0
    %289 = vmatpush1.xpose.msra.mxu0 %v215
    %290 = vmatprep.subr.mxu0 0.0
    %291 = vmatpush1.xpose.msra.mxu0 %v218
    %292 = vmatprep.subr.mxu0 0.0
    %293 = vmatpush1.xpose.msra.mxu0 %v221
    %294 = vmatprep.subr.mxu0 0.0
    %295 = vmatpush1.xpose.msra.mxu0 %v224
    %296 = vmatprep.subr.mxu0 0.0
    %297 = vmatpush1.xpose.msra.mxu0 %v227
    %298 = vmatprep.subr.mxu0 0.0
    %299 = vmatpush1.xpose.msra.mxu0 %v230
    %300 = vmatprep.subr.mxu0 0.0
    %301 = vmatpush1.xpose.msra.mxu0 %v233
    %302 = vmatprep.subr.mxu0 0.0
    %303 = vmatpush1.xpose.msra.mxu0 %v236
    %304 = vmatprep.subr.mxu0 0.0
    %305 = vmatpush1.xpose.msra.mxu0 %v239
    %306 = vmatprep.subr.mxu0 0.0
    %307 = vmatpush1.xpose.msra.mxu0 %v242
    %308 = vmatprep.mubr.f32.mxu0 0.0
    %309 = vmatmul.mubr.f32.gmra.mrb[0].mxu0 %v125
    %v310 = vpop.f32.mrb[0].mxu0
    %v311 = vadd.f32 %v86, %v310
    %v312 = vpop.f32.mrb[0].mxu0
    %v313 = vadd.f32 %v86, %v312
    %314 = vmatprep.mubr.f32.mxu0 0.0
    %315 = vmatmul.mubr.f32.gmra.mrb[0].mxu0 %v128
    %v316 = vpop.f32.mrb[0].mxu0
    %v317 = vadd.f32 %v91, %v316
    %v318 = vpop.f32.mrb[0].mxu0
    %v319 = vadd.f32 %v91, %v318
    %320 = vmatprep.mubr.f32.mxu0 0.0
    %321 = vmatmul.mubr.f32.gmra.mrb[0].mxu0 %v131
    %v322 = vpop.f32.mrb[0].mxu0
    %v323 = vadd.f32 %v96, %v322
    %v324 = vpop.f32.mrb[0].mxu0
    %v325 = vadd.f32 %v96, %v324
    %326 = vmatprep.mubr.f32.mxu0 0.0
    %327 = vmatmul.mubr.f32.gmra.mrb[0].mxu0 %v134
    %v328 = vpop.f32.mrb[0].mxu0
    %v329 = vadd.f32 %v101, %v328
    %v330 = vpop.f32.mrb[0].mxu0
    %v331 = vadd.f32 %v101, %v330
    %332 = vmatprep.mubr.f32.mxu0 0.0
    %333 = vmatmul.mubr.f32.gmra.mrb[0].mxu0 %v137
    %v334 = vpop.f32.mrb[0].mxu0
    %v335 = vadd.f32 %v106, %v334
    %v336 = vpop.f32.mrb[0].mxu0
    %v337 = vadd.f32 %v106, %v336
    %338 = vmatprep.mubr.f32.mxu0 0.0
    %339 = vmatmul.mubr.f32.gmra.mrb[0].mxu0 %v140
    %v340 = vpop.f32.mrb[0].mxu0
    %v341 = vadd.f32 %v111, %v340
    %v342 = vpop.f32.mrb[0].mxu0
    %v343 = vadd.f32 %v111, %v342
    %344 = vmatprep.mubr.f32.mxu0 0.0
    %345 = vmatmul.mubr.f32.gmra.mrb[0].mxu0 %v143
    %v346 = vpop.f32.mrb[0].mxu0
    %v347 = vadd.f32 %v116, %v346
    %v348 = vpop.f32.mrb[0].mxu0
    %v349 = vadd.f32 %v116, %v348
    %350 = vmatprep.mubr.f32.mxu0 0.0
    %351 = vmatmul.mubr.f32.gmra.mrb[0].mxu0 %v146
    %v352 = vpop.f32.mrb[0].mxu0
    %v353 = vadd.f32 %v121, %v352
    %v354 = vpop.f32.mrb[0].mxu0
    %v355 = vadd.f32 %v121, %v354
    %356 = vdwg.mxu0
    %v357 = vmax.f32 %v311, 0.0
    %v358 = vmax.f32 %v313, 0.0
    %v359 = vmax.f32 %v317, 0.0
    %v360 = vmax.f32 %v319, 0.0
    %v361 = vmax.f32 %v323, 0.0
    %v362 = vmax.f32 %v325, 0.0
    %v363 = vmax.f32 %v329, 0.0
    %v364 = vmax.f32 %v331, 0.0
    %v365 = vmax.f32 %v335, 0.0
    %v366 = vmax.f32 %v337, 0.0
    %v367 = vmax.f32 %v341, 0.0
    %v368 = vmax.f32 %v343, 0.0
    %v369 = vmax.f32 %v347, 0.0
    %v370 = vmax.f32 %v349, 0.0
    %v371 = vmax.f32 %v353, 0.0
    %v372 = vmax.f32 %v355, 0.0
    %v373 = vld [vmem:[%s3] sm:$0xff]
    %v374 = vld [vmem:[%s3 + $0x8] sm:$0xff]
    %v375 = vld [vmem:[%s3 + $0x10] sm:$0xff]
    %v376 = vld [vmem:[%s3 + $0x18] sm:$0xff]
    %v377 = vld [vmem:[%s4] sm:$0xff]
    %v378 = vld [vmem:[%s4 + $0x8] sm:$0xff]
    %v379 = vld [vmem:[%s4 + $0x10] sm:$0xff]
    %v380 = vld [vmem:[%s4 + $0x18] sm:$0xff]
    %382 = vset.pattern.permute.xlu0 0
    %383 = vperm.xlu0 %382, %v377
    %v384 = vpop.permute.xlu0 %383
    %387 = vset.pattern.permute.xlu0 0
    %388 = vperm.xlu0 %387, %v378
    %v389 = vpop.permute.xlu0 %388
    %392 = vset.pattern.permute.xlu0 0
    %393 = vperm.xlu0 %392, %v379
    %v394 = vpop.permute.xlu0 %393
    %397 = vset.pattern.permute.xlu0 0
    %398 = vperm.xlu0 %397, %v380
    %v399 = vpop.permute.xlu0 %398
    %vm401 = vcmask 523264
    %v403 = vsel %vm401, %v373, 0
    %v406 = vsel %vm401, %v374, 0
    %v409 = vsel %vm401, %v375, 0
    %v412 = vsel %vm401, %v376, 0
    %414 = vmatprep.subr.mxu0 %v358
    %415 = vmatpush1.msra.mxu0 %v357
    %416 = vmatprep.subr.mxu0 %v360
    %417 = vmatpush1.msra.mxu0 %v359
    %418 = vmatprep.subr.mxu0 %v362
    %419 = vmatpush1.msra.mxu0 %v361
    %420 = vmatprep.subr.mxu0 %v364
    %421 = vmatpush1.msra.mxu0 %v363
    %422 = vmatprep.subr.mxu0 %v366
    %423 = vmatpush1.msra.mxu0 %v365
    %424 = vmatprep.subr.mxu0 %v368
    %425 = vmatpush1.msra.mxu0 %v367
    %426 = vmatprep.subr.mxu0 %v370
    %427 = vmatpush1.msra.mxu0 %v369
    %428 = vmatprep.subr.mxu0 %v372
    %429 = vmatpush1.msra.mxu0 %v371
    %430 = vmatprep.subr.mxu0 0.0
    %431 = vmatpush1.msra.mxu0 0.0
    %432 = vmatprep.subr.mxu0 0.0
    %433 = vmatpush1.msra.mxu0 0.0
    %434 = vmatprep.subr.mxu0 0.0
    %435 = vmatpush1.msra.mxu0 0.0
    %436 = vmatprep.subr.mxu0 0.0
    %437 = vmatpush1.msra.mxu0 0.0
    %438 = vmatprep.subr.mxu0 0.0
    %439 = vmatpush1.msra.mxu0 0.0
    %440 = vmatprep.subr.mxu0 0.0
    %441 = vmatpush1.msra.mxu0 0.0
    %442 = vmatprep.subr.mxu0 0.0
    %443 = vmatpush1.msra.mxu0 0.0
    %444 = vmatprep.subr.mxu0 0.0
    %445 = vmatpush1.msra.mxu0 0.0
    %446 = vmatprep.subr.mxu0 0.0
    %447 = vmatpush1.msra.mxu0 0.0
    %448 = vmatprep.subr.mxu0 0.0
    %449 = vmatpush1.msra.mxu0 0.0
    %450 = vmatprep.subr.mxu0 0.0
    %451 = vmatpush1.msra.mxu0 0.0
    %452 = vmatprep.subr.mxu0 0.0
    %453 = vmatpush1.msra.mxu0 0.0
    %454 = vmatprep.subr.mxu0 0.0
    %455 = vmatpush1.msra.mxu0 0.0
    %456 = vmatprep.subr.mxu0 0.0
    %457 = vmatpush1.msra.mxu0 0.0
    %458 = vmatprep.subr.mxu0 0.0
    %459 = vmatpush1.msra.mxu0 0.0
    %460 = vmatprep.subr.mxu0 0.0
    %461 = vmatpush1.msra.mxu0 0.0
    %462 = vmatprep.subr.mxu0 0.0
    %463 = vmatpush1.msra.mxu0 0.0
    %464 = vmatprep.subr.mxu0 0.0
    %465 = vmatpush1.msra.mxu0 0.0
    %466 = vmatprep.subr.mxu0 0.0
    %467 = vmatpush1.msra.mxu0 0.0
    %468 = vmatprep.subr.mxu0 0.0
    %469 = vmatpush1.msra.mxu0 0.0
    %470 = vmatprep.subr.mxu0 0.0
    %471 = vmatpush1.msra.mxu0 0.0
    %472 = vmatprep.subr.mxu0 0.0
    %473 = vmatpush1.msra.mxu0 0.0
    %474 = vmatprep.subr.mxu0 0.0
    %475 = vmatpush1.msra.mxu0 0.0
    %476 = vmatprep.subr.mxu0 0.0
    %477 = vmatpush1.msra.mxu0 0.0
    %478 = vmatprep.mubr.f32.mxu0 0.0
    %479 = vmatmul.mubr.f32.gmra.mrb[0].mxu0 %v403
    %v480 = vpop.f32.mrb[0].mxu0
    %v481 = vadd.f32 %v384, %v480
    %v482 = vpop.f32.mrb[0].mxu0
    %v483 = vadd.f32 %v384, %v482
    %484 = vmatprep.mubr.f32.mxu0 0.0
    %485 = vmatmul.mubr.f32.gmra.mrb[0].mxu0 %v406
    %v486 = vpop.f32.mrb[0].mxu0
    %v487 = vadd.f32 %v389, %v486
    %v488 = vpop.f32.mrb[0].mxu0
    %v489 = vadd.f32 %v389, %v488
    %490 = vmatprep.mubr.f32.mxu0 0.0
    %491 = vmatmul.mubr.f32.gmra.mrb[0].mxu0 %v409
    %v492 = vpop.f32.mrb[0].mxu0
    %v493 = vadd.f32 %v394, %v492
    %v494 = vpop.f32.mrb[0].mxu0
    %v495 = vadd.f32 %v394, %v494
    %496 = vmatprep.mubr.f32.mxu0 0.0
    %497 = vmatmul.mubr.f32.gmra.mrb[0].mxu0 %v412
    %v498 = vpop.f32.mrb[0].mxu0
    %v499 = vadd.f32 %v399, %v498
    %v500 = vpop.f32.mrb[0].mxu0
    %v501 = vadd.f32 %v399, %v500
    %502 = vdwg.mxu0
    %v503 = vmax.f32 %v481, 0.0
    %v504 = vmax.f32 %v483, 0.0
    %v505 = vmax.f32 %v487, 0.0
    %v506 = vmax.f32 %v489, 0.0
    %v507 = vmax.f32 %v493, 0.0
    %v508 = vmax.f32 %v495, 0.0
    %v509 = vmax.f32 %v499, 0.0
    %v510 = vmax.f32 %v501, 0.0
    %v511 = vld [vmem:[%s5] sm:$0xff]
    %v512 = vld [vmem:[%s5 + $0x8] sm:$0xff]
    %v513 = vld [vmem:[%s6] sm:$0xff]
    %v514 = vld [vmem:[%s6 + $0x8] sm:$0xff]
    %516 = vset.pattern.permute.xlu0 0
    %517 = vperm.xlu0 %516, %v513
    %v518 = vpop.permute.xlu0 %517
    %521 = vset.pattern.permute.xlu0 0
    %522 = vperm.xlu0 %521, %v514
    %v523 = vpop.permute.xlu0 %522
    %vm525 = vcmask 261120
    %v527 = vsel %vm525, %v511, 0
    %v530 = vsel %vm525, %v512, 0
    %532 = vmatprep.subr.mxu0 %v504
    %533 = vmatpush1.msra.mxu0 %v503
    %534 = vmatprep.subr.mxu0 %v506
    %535 = vmatpush1.msra.mxu0 %v505
    %536 = vmatprep.subr.mxu0 %v508
    %537 = vmatpush1.msra.mxu0 %v507
    %538 = vmatprep.subr.mxu0 %v510
    %539 = vmatpush1.msra.mxu0 %v509
    %540 = vmatprep.subr.mxu0 0.0
    %541 = vmatpush1.msra.mxu0 0.0
    %542 = vmatprep.subr.mxu0 0.0
    %543 = vmatpush1.msra.mxu0 0.0
    %544 = vmatprep.subr.mxu0 0.0
    %545 = vmatpush1.msra.mxu0 0.0
    %546 = vmatprep.subr.mxu0 0.0
    %547 = vmatpush1.msra.mxu0 0.0
    %548 = vmatprep.subr.mxu0 0.0
    %549 = vmatpush1.msra.mxu0 0.0
    %550 = vmatprep.subr.mxu0 0.0
    %551 = vmatpush1.msra.mxu0 0.0
    %552 = vmatprep.subr.mxu0 0.0
    %553 = vmatpush1.msra.mxu0 0.0
    %554 = vmatprep.subr.mxu0 0.0
    %555 = vmatpush1.msra.mxu0 0.0
    %556 = vmatprep.subr.mxu0 0.0
    %557 = vmatpush1.msra.mxu0 0.0
    %558 = vmatprep.subr.mxu0 0.0
    %559 = vmatpush1.msra.mxu0 0.0
    %560 = vmatprep.subr.mxu0 0.0
    %561 = vmatpush1.msra.mxu0 0.0
    %562 = vmatprep.subr.mxu0 0.0
    %563 = vmatpush1.msra.mxu0 0.0
    %564 = vmatprep.subr.mxu0 0.0
    %565 = vmatpush1.msra.mxu0 0.0
    %566 = vmatprep.subr.mxu0 0.0
    %567 = vmatpush1.msra.mxu0 0.0
    %568 = vmatprep.subr.mxu0 0.0
    %569 = vmatpush1.msra.mxu0 0.0
    %570 = vmatprep.subr.mxu0 0.0
    %571 = vmatpush1.msra.mxu0 0.0
    %572 = vmatprep.subr.mxu0 0.0
    %573 = vmatpush1.msra.mxu0 0.0
    %574 = vmatprep.subr.mxu0 0.0
    %575 = vmatpush1.msra.mxu0 0.0
    %576 = vmatprep.subr.mxu0 0.0
    %577 = vmatpush1.msra.mxu0 0.0
    %578 = vmatprep.subr.mxu0 0.0
    %579 = vmatpush1.msra.mxu0 0.0
    %580 = vmatprep.subr.mxu0 0.0
    %581 = vmatpush1.msra.mxu0 0.0
    %582 = vmatprep.subr.mxu0 0.0
    %583 = vmatpush1.msra.mxu0 0.0
    %584 = vmatprep.subr.mxu0 0.0
    %585 = vmatpush1.msra.mxu0 0.0
    %586 = vmatprep.subr.mxu0 0.0
    %587 = vmatpush1.msra.mxu0 0.0
    %588 = vmatprep.subr.mxu0 0.0
    %589 = vmatpush1.msra.mxu0 0.0
    %590 = vmatprep.subr.mxu0 0.0
    %591 = vmatpush1.msra.mxu0 0.0
    %592 = vmatprep.subr.mxu0 0.0
    %593 = vmatpush1.msra.mxu0 0.0
    %594 = vmatprep.subr.mxu0 0.0
    %595 = vmatpush1.msra.mxu0 0.0
    %596 = vmatprep.mubr.f32.mxu0 0.0
    %597 = vmatmul.mubr.f32.gmra.mrb[0].mxu0 %v527
    %v598 = vpop.f32.mrb[0].mxu0
    %v599 = vadd.f32 %v518, %v598
    %v600 = vpop.f32.mrb[0].mxu0
    %v601 = vadd.f32 %v518, %v600
    %602 = vmatprep.mubr.f32.mxu0 0.0
    %603 = vmatmul.mubr.f32.gmra.mrb[0].mxu0 %v530
    %v604 = vpop.f32.mrb[0].mxu0
    %v605 = vadd.f32 %v523, %v604
    %v606 = vpop.f32.mrb[0].mxu0
    %v607 = vadd.f32 %v523, %v606
    %608 = vdwg.mxu0
    %v609 = vmax.f32 %v599, 0.0
    %v610 = vmax.f32 %v601, 0.0
    %v611 = vmax.f32 %v605, 0.0
    %v612 = vmax.f32 %v607, 0.0
    %v613 = vld [vmem:[%s7] sm:$0xff]
    %v614 = vld [vmem:[%s7 + $0x8] sm:$0xff]
    %616 = vset.pattern.permute.xlu0 0
    %617 = vperm.xlu0 %616, %v613
    %v618 = vpop.permute.xlu0 %617
    %621 = vset.pattern.permute.xlu0 0
    %622 = vperm.xlu0 %621, %v614
    %v623 = vpop.permute.xlu0 %622
    %v625 = vmul.f32 %v609, %v618
    %v626 = vmul.f32 %v610, %v618
    %v627 = vmul.f32 %v611, %v623
    %v628 = vmul.f32 %v612, %v623
    %v629 = vadd.f32 %v625, %v627
    %v630 = vrot.slane %v629, 4
    %v631 = vadd.f32 %v629, %v630
    %v632 = vrot.slane %v631, 2
    %v633 = vadd.f32 %v631, %v632
    %v634 = vrot.slane %v633, 1
    %v635 = vadd.f32 %v633, %v634
    %v636 = vadd.f32 %v626, %v628
    %v637 = vrot.slane %v636, 4
    %v638 = vadd.f32 %v636, %v637
    %v639 = vrot.slane %v638, 2
    %v640 = vadd.f32 %v638, %v639
    %v641 = vrot.slane %v640, 1
    %v642 = vadd.f32 %v640, %v641
    %v643 = vld [vmem:[#allocation2] sm:$0x1]
    %645 = vset.pattern.permute.xlu0 0
    %646 = vperm.xlu0 %645, %v643
    %v647 = vpop.permute.xlu0 %646
    %v649 = vlaneseq
    %v650 = vshrl.u32 %v649, 7
    %v651 = vsub.s32 0, %v650
    %v652 = vrot.slane %v647, %v651
    %v653 = vadd.f32 %v635, %v652
    %v654 = vadd.f32 %v642, %v652
    %vm655 = vcmp.gt.f32.partialorder %v653, 20.0
    %vm656 = vcmp.gt.f32.partialorder %v654, 20.0
    %v657 = vmin.f32 %v653, 20.0
    %v658 = vmin.f32 %v654, 20.0
    %v659 = vmul.f32 %v657, 1.442695
    %v660 = vpow.pop %v659
    %v661 = vmul.f32 %v658, 1.442695
    %v662 = vpow.pop %v661
    %v663 = vadd.f32 %v660, 1.0
    %v664 = vlog2.pop %v663
    %v665 = vmul.f32 %v664, 0.6931472
    %v666 = vmul.f32 -0.5, %v660
    %v667 = vadd.f32 %v666, 1.0
    %v668 = vmul.f32 %v667, %v660
    %v669 = vand.u32 2147483647, %v660
    %vm670 = vcmp.lt.f32.partialorder %v669, 0.0004427343
    %v671 = vsel %vm670, %v668, %v665
    %v672 = vadd.f32 %v662, 1.0
    %v673 = vlog2.pop %v672
    %v674 = vmul.f32 %v673, 0.6931472
    %v675 = vmul.f32 -0.5, %v662
    %v676 = vadd.f32 %v675, 1.0
    %v677 = vmul.f32 %v676, %v662
    %v678 = vand.u32 2147483647, %v662
    %vm679 = vcmp.lt.f32.partialorder %v678, 0.0004427343
    %v680 = vsel %vm679, %v677, %v674
    %v681 = vsel %vm655, %v653, %v671
    %v682 = vsel %vm656, %v654, %v680
    %v685 = vcombine.low %v681, %v682
    %v687 = vunpack.c.l.s4 1966171168
    %v688 = vunpack.c.0.s8 %v687
    %v689 = vlaneseq
    %v690 = vshrl.u32 %v689, 7
    %v691 = vsub.s32 %v688, %v690
    %v692 = vrot.slane %v685, %v691
    %v694 = vunpack.c.l.s4 1966171168
    %v695 = vunpack.c.0.s8 %v694
    %v696 = vlaneseq
    %v697 = vshrl.u32 %v696, 7
    %v698 = vsub.s32 %v695, %v697
    %v699 = vrot.slane %v692, %v698
    %v701 = vlaneseq
    %vm702 = vcmp.ge.s32.totalorder %v701, 0
    %vm703 = vcmp.lt.s32.totalorder %v701, 256
    %vm704 = vmand %vm702, %vm703
    %705 = vst.msk [vmem:[#allocation3] sm:$0x3] %vm704, %v699
    // Predicated region
    $region38: #{tpu_custom_call.1} parent=1 // pred_check
      _
    $region39: #{tpu_custom_call.1} parent=1 // pred_check_branch
      %707 = sbr.rel (0) target = $region41
    $region40: #{tpu_custom_call.1} parent=1 // pred_region
      %s709 = ssub.s32 32, 32
      %710 = vsyncadd [#allocation4], %s709
      %s712 = sshll.u32 [#allocation3], 4
      %s713 = int_to_ptr.vmem [resolvable:$true] %s712
      %715 = dma.vmem_to_hbm [thread:$0]  %s713, 32, %s9, [#allocation4]
    $region41: #{tpu_custom_call.1} parent=1 // pred_fallthru
      _
    // Predicated region
    $region42: #{tpu_custom_call.1} parent=1 // pred_check
      _
    $region43: #{tpu_custom_call.1} parent=1 // pred_check_branch
      %717 = sbr.rel (0) target = $region45
    $region44: #{tpu_custom_call.1} parent=1 // pred_region
      %718 = dma.done [#allocation4], 32
    $region45: #{tpu_custom_call.1} parent=1 // pred_fallthru
      _
    %719 = vsyncpa [#allocation4], 1

</llo_original>
